<compile_context>
chip_gen: v5e
topology: v5e:2x2
jax: 0.10.0
libtpu: 0.0.40
codegen_flags: <defaults>
</compile_context>

<pallas_src>
import jax
import jax.numpy as jnp
from jax.experimental import pallas as pl
from jax.experimental.pallas import tpu as pltpu


def _identity_hbm_copy_kernel(x_hbm, out_hbm, sem):
    # Abstract Decoder: no computation defined -> identity on X.
    # One HBM->HBM DMA for the whole array; the DMA engine streams at the HBM
    # roofline with no TensorCore vld/vst involvement and no VMEM staging.
    cp = pltpu.make_async_copy(x_hbm, out_hbm, sem)
    cp.start()
    cp.wait()


def decoder_forward(x, state, *, force_kernel=False):
    """Pallas wrapper mirroring Decoder.forward(X, state).

    Default: identity short-circuit (no kernel launch, no extra HBM traffic).
    `force_kernel=True`: run the interface placeholder as a single HBM->HBM
    DMA copy kernel (used by the test below to exercise the Pallas path).
    """
    del state  # interface-only argument; no computation defined on it

    if not force_kernel:
        # Highest-value "optimization": an identity needs no kernel at all.
        return x

    orig_shape = x.shape
    size = x.size
    itemsize = jnp.dtype(x.dtype).itemsize

    # Lane-dense 2D view of the (contiguous, row-major) data. Purely a
    # metadata reshape; for a full-ref DMA the shape only affects descriptor
    # generation, not correctness.
    if size % 128 == 0:
        x2 = x.reshape(size // 128, 128)
    else:
        x2 = x.reshape(1, size)

    out = pl.pallas_call(
        _identity_hbm_copy_kernel,
        out_shape=jax.ShapeDtypeStruct(x2.shape, x.dtype),
        # No grid, no VMEM pipeline: both refs stay in HBM, copied by one DMA.
        in_specs=[pl.BlockSpec(memory_space=pl.ANY)],
        out_specs=pl.BlockSpec(memory_space=pl.ANY),
        scratch_shapes=[pltpu.SemaphoreType.DMA(())],
        cost_estimate=pl.CostEstimate(
            flops=0,
            transcendentals=0,
            bytes_accessed=2 * size * itemsize,
        ),
    )(x2)

    return out.reshape(orig_shape)


if __name__ == "__main__":
    key = jax.random.PRNGKey(0)
    kx, ks = jax.random.split(key)

    B, S, H = 2, 8, 128  # batch=2, seq=8, hidden=128
    x = jax.random.normal(kx, (B, S, H), dtype=jnp.float32)
    state = jax.random.normal(ks, (B, H), dtype=jnp.float32)

    expected = jnp.copy(x)

    # Exercise the Pallas DMA kernel path.
    out = decoder_forward(x, state, force_kernel=True)
    out = jax.block_until_ready(out)
    assert out.shape == expected.shape and out.dtype == expected.dtype
    assert bool(jnp.all(out == expected))

    # Also check the default short-circuit path.
    out_fast = jax.block_until_ready(decoder_forward(x, state))
    assert bool(jnp.all(out_fast == expected))

    print("KERNEL_OK")
</pallas_src>

<mosaic_0001>
module attributes {stable_mosaic.version = 11 : i64} {
  func.func @_identity_hbm_copy_kernel(%arg0: memref<16x128xf32, #tpu.memory_space<any>>, %arg1: memref<16x128xf32, #tpu.memory_space<any>>, %arg2: memref<!tpu.dma_semaphore, #tpu.memory_space<semaphore_mem>>) attributes {dimension_semantics = [], scalar_prefetch = 0 : i64, scratch_operands = 1 : i64, tpu.core_type = #tpu.core_type<tc>} {
    tpu.enqueue_dma source(%arg0 : memref<16x128xf32, #tpu.memory_space<any>>) target(%arg1 : memref<16x128xf32, #tpu.memory_space<any>>) target_semaphore(%arg2 : memref<!tpu.dma_semaphore, #tpu.memory_space<semaphore_mem>>)
    tpu.wait_dma2 semaphore(%arg2 : memref<!tpu.dma_semaphore, #tpu.memory_space<semaphore_mem>>) src(%arg0 : memref<16x128xf32, #tpu.memory_space<any>>) dst(%arg1 : memref<16x128xf32, #tpu.memory_space<any>>)
    return
  }
}

</mosaic_0001>

<llo_original>
// kernel: tpu_custom_call.1
$region0: #{tpu_custom_call.1}
  #allocation0 [shape = 'u32[]', space=smem, size = 0x4, offset = 0x4, fixed_abs, tag = 'smem constant byte address 0x4 - core index']
  #allocation1 [shape = 'u32[72,128]{1,0:T(1,128)}', space=vmem, size = 0x9000, scoped, tag = 'internal scratch']
  #allocation2 [shape = 's32[1]{0}', space=sflag, size = 0x4, scoped, tag = 'scratch operand']
  #allocation3 [shape = 's32[]', space=sflag, size = 0x4, offset = 0, fixed_abs, tag = 'sflag constant byte address 0x0 - dummy sync flag']
  #allocation4 [shape = 'u32[0]{0}', space=smem, size = 0, offset = 0, fixed_abs, tag = 'smem constant byte address 0x0 - null']
  %s0 = inlined_call_operand.hbm [shape: f32[16,128], index: 0, kind: input, shape index: {}]
  %s1 = inlined_call_operand.hbm [shape: f32[16,128], index: 1, kind: output, shape index: {}]
  %s2 = sld [smem:[#allocation0]]
  $region2: #{tpu_custom_call.1} parent=0
    _
  %s4 = ssub.s32 1, %s2
  %s5 = scalar_select 0, %s4, %s2
  %s7 = sshll.u32 1, 14
  %s8 = sxor.u32 4294967295, %s7
  %s10 = sshll.u32 %s0, 4
  %s11 = int_to_ptr.hbm [resolvable:$true] %s10
  %s12 = sshll.u32 %s1, 4
  %s13 = int_to_ptr.hbm [resolvable:$true] %s12
  %16 = dma.general %s11, 256, %s13, [#allocation2], [#allocation3], [#allocation4], 0, 0
  %s17 = smul.u32 16, 1
  %s18 = sshll.u32 %s17, 4
  %19 = dma.done [#allocation2], %s18
  %20 = vsyncmov [#allocation2]
  %s21 = vpop.sfrf %20
  %p22 = scmp.eq.s32.totalorder %s21, 0
  %p23 = pneg %p22
  %25 = shalt.err (%p23)

</llo_original>
